<compile_context>
chip_gen: v7x
topology: tpu7x:2x2x1
jax: 0.10.0
libtpu: 0.0.40
codegen_flags: <defaults>
</compile_context>

<pallas_src>
import jax
import jax.numpy as jnp
from jax.experimental import pallas as pl
from jax.experimental.pallas import tpu as pltpu


def _round_up(n: int, m: int) -> int:
    return (n + m - 1) // m * m


def mlp_kernel(x_ref, w1_ref, b1_ref, w2_ref, b2_ref, w3_ref, b3_ref,
               w4_ref, b4_ref, o_ref):
    """One batch tile. Activations are feature-major: (features, TILE_B)."""
    xt = x_ref[...]                                                    # (7,  TB) bf16

    h1 = jnp.dot(w1_ref[...], xt,
                 preferred_element_type=jnp.float32) + b1_ref[...]     # (72, TB) f32
    h1 = jnp.maximum(h1, 0.0)

    h2 = jnp.dot(w2_ref[...], h1.astype(jnp.bfloat16),
                 preferred_element_type=jnp.float32) + b2_ref[...]     # (100,TB) f32
    h2 = jnp.maximum(h2, 0.0)

    h3 = jnp.dot(w3_ref[...], h2.astype(jnp.bfloat16),
                 preferred_element_type=jnp.float32) + b3_ref[...]     # (10, TB) f32
    h3 = jnp.maximum(h3, 0.0)

    z = jnp.dot(w4_ref[...], h3.astype(jnp.bfloat16),
                preferred_element_type=jnp.float32) + b4_ref[...]      # (1,  TB) f32

    # sigmoid(z) = 1 / (1 + exp(-z)); exp and approx reciprocal both land on the EUP
    # slot, keeping the VALU free in the per-step epilogue.
    o_ref[...] = pl.reciprocal(1.0 + jnp.exp(-z), approx=True).astype(o_ref.dtype)


def mlp_forward(x, params, *, tile_b=4096):
    """x: (B, 7) float32 -> (B, 1) float32 sigmoid outputs."""
    B, f_in = x.shape
    assert f_in == 7, f_in

    # Lane-aligned batch tile; don't over-pad tiny batches.
    tb = min(tile_b, _round_up(B, 128))
    b_pad = _round_up(B, tb)
    n_tiles = b_pad // tb

    # bf16 matmul operands (halves the HBM stream that scales with B); the transpose
    # puts the batch axis on lanes so every kernel load/store is lane-dense.
    xt = x.astype(jnp.bfloat16).T                     # (7, B)
    if b_pad != B:
        xt = jnp.pad(xt, ((0, 0), (0, b_pad - B)))

    ws = [params[f"w{i}"].astype(jnp.bfloat16) for i in range(1, 5)]   # (out, in)
    bs = [params[f"b{i}"].astype(jnp.float32) for i in range(1, 5)]    # (out, 1)

    def resident(a):
        # Whole array, same block every grid step -> DMA'd once, stays in VMEM.
        return pl.BlockSpec(a.shape, lambda i: (0, 0))

    weight_bytes = sum(int(w.size) * 2 for w in ws) + sum(int(b.size) * 4 for b in bs)
    flops = 2 * b_pad * (7 * 72 + 72 * 100 + 100 * 10 + 10 * 1)

    out = pl.pallas_call(
        mlp_kernel,
        out_shape=jax.ShapeDtypeStruct((1, b_pad), jnp.float32),
        grid=(n_tiles,),
        in_specs=[
            pl.BlockSpec((7, tb), lambda i: (0, i)),       # pipelined activation stream
            resident(ws[0]), resident(bs[0]),
            resident(ws[1]), resident(bs[1]),
            resident(ws[2]), resident(bs[2]),
            resident(ws[3]), resident(bs[3]),
        ],
        out_specs=pl.BlockSpec((1, tb), lambda i: (0, i)),  # lane-dense output block
        compiler_params=pltpu.CompilerParams(
            dimension_semantics=("parallel",),              # megacore sharding on v7x
        ),
        cost_estimate=pl.CostEstimate(
            flops=flops,
            transcendentals=b_pad,
            bytes_accessed=b_pad * (7 * 2 + 4) + weight_bytes,
        ),
    )(xt, ws[0], bs[0], ws[1], bs[1], ws[2], bs[2], ws[3], bs[3])

    # (1, b_pad) -> (b_pad, 1) is a free row-major reshape; drop the pad rows.
    return out.reshape(b_pad, 1)[:B]


def init_params(key):
    """nn.Linear default init; weights kept in PyTorch (out_features, in_features) layout."""
    dims = [(7, 72), (72, 100), (100, 10), (10, 1)]
    params = {}
    keys = jax.random.split(key, 2 * len(dims))
    for i, (fan_in, fan_out) in enumerate(dims):
        bound = 1.0 / (fan_in ** 0.5)
        params[f"w{i + 1}"] = jax.random.uniform(
            keys[2 * i], (fan_out, fan_in), minval=-bound, maxval=bound, dtype=jnp.float32)
        params[f"b{i + 1}"] = jax.random.uniform(
            keys[2 * i + 1], (fan_out, 1), minval=-bound, maxval=bound, dtype=jnp.float32)
    return params


def reference_forward(x, p):
    """Pure-JAX reference mirroring the kernel's precision policy
    (bf16 matmul operands, f32 accumulation, f32 elementwise)."""
    def layer(h, w, b):
        return jnp.dot(h.astype(jnp.bfloat16), w.astype(jnp.bfloat16).T,
                       preferred_element_type=jnp.float32) + b.reshape(1, -1)

    h = jnp.maximum(layer(x, p["w1"], p["b1"]), 0.0)
    h = jnp.maximum(layer(h, p["w2"], p["b2"]), 0.0)
    h = jnp.maximum(layer(h, p["w3"], p["b3"]), 0.0)
    return jax.nn.sigmoid(layer(h, p["w4"], p["b4"]))


if __name__ == "__main__":
    key = jax.random.PRNGKey(0)
    pkey, xkey = jax.random.split(key)
    params = init_params(pkey)

    batch = 8
    x = jax.random.normal(xkey, (batch, 7), dtype=jnp.float32)

    out = jax.block_until_ready(mlp_forward(x, params))
    ref = reference_forward(x, params)

    assert out.shape == (batch, 1), out.shape
    assert bool(jnp.all(jnp.isfinite(out))), "non-finite output"
    assert jnp.allclose(out, ref, atol=5e-3, rtol=5e-3), "mismatch vs reference"

    print("KERNEL_OK")
</pallas_src>

<mosaic_0001>
module attributes {stable_mosaic.version = 11 : i64} {
  func.func @mlp_kernel(%arg0: i32, %arg1: memref<7x128xbf16, #tpu.memory_space<vmem>>, %arg2: memref<72x7xbf16, #tpu.memory_space<vmem>>, %arg3: memref<72x1xf32, #tpu.memory_space<vmem>>, %arg4: memref<100x72xbf16, #tpu.memory_space<vmem>>, %arg5: memref<100x1xf32, #tpu.memory_space<vmem>>, %arg6: memref<10x100xbf16, #tpu.memory_space<vmem>>, %arg7: memref<10x1xf32, #tpu.memory_space<vmem>>, %arg8: memref<1x10xbf16, #tpu.memory_space<vmem>>, %arg9: memref<1x1xf32, #tpu.memory_space<vmem>>, %arg10: memref<1x128xf32, #tpu.memory_space<vmem>>) attributes {dimension_semantics = [#tpu.dimension_semantics<parallel>], iteration_bounds = array<i64: 1>, scalar_prefetch = 0 : i64, scratch_operands = 0 : i64, tpu.core_type = #tpu.core_type<tc>, window_params = [{transform_indices = @transform_0, window_bounds = array<i64: 7, 128>}, {pipeline_mode = #tpu.pipeline_mode<synchronous>, transform_indices = @transform_1, window_bounds = array<i64: 72, 7>}, {pipeline_mode = #tpu.pipeline_mode<synchronous>, transform_indices = @transform_2, window_bounds = array<i64: 72, 1>}, {pipeline_mode = #tpu.pipeline_mode<synchronous>, transform_indices = @transform_3, window_bounds = array<i64: 100, 72>}, {pipeline_mode = #tpu.pipeline_mode<synchronous>, transform_indices = @transform_4, window_bounds = array<i64: 100, 1>}, {pipeline_mode = #tpu.pipeline_mode<synchronous>, transform_indices = @transform_5, window_bounds = array<i64: 10, 100>}, {pipeline_mode = #tpu.pipeline_mode<synchronous>, transform_indices = @transform_6, window_bounds = array<i64: 10, 1>}, {pipeline_mode = #tpu.pipeline_mode<synchronous>, transform_indices = @transform_7, window_bounds = array<i64: 1, 10>}, {pipeline_mode = #tpu.pipeline_mode<synchronous>, transform_indices = @transform_8, window_bounds = array<i64: 1, 1>}, {transform_indices = @transform_9, window_bounds = array<i64: 1, 128>}]} {
    %c0 = arith.constant 0 : index
    %c0_0 = arith.constant 0 : index
    %0 = vector.load %arg1[%c0, %c0_0] : memref<7x128xbf16, #tpu.memory_space<vmem>>, vector<7x128xbf16>
    %c0_1 = arith.constant 0 : index
    %c0_2 = arith.constant 0 : index
    %1 = vector.load %arg2[%c0_1, %c0_2] : memref<72x7xbf16, #tpu.memory_space<vmem>>, vector<72x7xbf16>
    %cst = arith.constant dense<0.000000e+00> : vector<72x128xf32>
    %2 = tpu.matmul %1, %0, %cst {dimension_numbers = #tpu.dot_dimension_numbers<[1], [0], [0], [1], [0, 0, 1, 1], [], []>} : vector<72x7xbf16>, vector<7x128xbf16>, vector<72x128xf32> -> vector<72x128xf32>
    %c0_3 = arith.constant 0 : index
    %c0_4 = arith.constant 0 : index
    %3 = vector.load %arg3[%c0_3, %c0_4] : memref<72x1xf32, #tpu.memory_space<vmem>>, vector<72x1xf32>
    %4 = vector.broadcast %3 : vector<72x1xf32> to vector<72x128xf32>
    %5 = arith.addf %2, %4 : vector<72x128xf32>
    %cst_5 = arith.constant 0.000000e+00 : f32
    %6 = vector.broadcast %cst_5 : f32 to vector<72x128xf32>
    %7 = arith.maximumf %5, %6 : vector<72x128xf32>
    %c0_6 = arith.constant 0 : index
    %c0_7 = arith.constant 0 : index
    %8 = vector.load %arg4[%c0_6, %c0_7] : memref<100x72xbf16, #tpu.memory_space<vmem>>, vector<100x72xbf16>
    %9 = arith.truncf %7 : vector<72x128xf32> to vector<72x128xbf16>
    %cst_8 = arith.constant dense<0.000000e+00> : vector<100x128xf32>
    %10 = tpu.matmul %8, %9, %cst_8 {dimension_numbers = #tpu.dot_dimension_numbers<[1], [0], [0], [1], [0, 0, 1, 1], [], []>} : vector<100x72xbf16>, vector<72x128xbf16>, vector<100x128xf32> -> vector<100x128xf32>
    %c0_9 = arith.constant 0 : index
    %c0_10 = arith.constant 0 : index
    %11 = vector.load %arg5[%c0_9, %c0_10] : memref<100x1xf32, #tpu.memory_space<vmem>>, vector<100x1xf32>
    %12 = vector.broadcast %11 : vector<100x1xf32> to vector<100x128xf32>
    %13 = arith.addf %10, %12 : vector<100x128xf32>
    %cst_11 = arith.constant 0.000000e+00 : f32
    %14 = vector.broadcast %cst_11 : f32 to vector<100x128xf32>
    %15 = arith.maximumf %13, %14 : vector<100x128xf32>
    %c0_12 = arith.constant 0 : index
    %c0_13 = arith.constant 0 : index
    %16 = vector.load %arg6[%c0_12, %c0_13] : memref<10x100xbf16, #tpu.memory_space<vmem>>, vector<10x100xbf16>
    %17 = arith.truncf %15 : vector<100x128xf32> to vector<100x128xbf16>
    %cst_14 = arith.constant dense<0.000000e+00> : vector<10x128xf32>
    %18 = tpu.matmul %16, %17, %cst_14 {dimension_numbers = #tpu.dot_dimension_numbers<[1], [0], [0], [1], [0, 0, 1, 1], [], []>} : vector<10x100xbf16>, vector<100x128xbf16>, vector<10x128xf32> -> vector<10x128xf32>
    %c0_15 = arith.constant 0 : index
    %c0_16 = arith.constant 0 : index
    %19 = vector.load %arg7[%c0_15, %c0_16] : memref<10x1xf32, #tpu.memory_space<vmem>>, vector<10x1xf32>
    %20 = vector.broadcast %19 : vector<10x1xf32> to vector<10x128xf32>
    %21 = arith.addf %18, %20 : vector<10x128xf32>
    %cst_17 = arith.constant 0.000000e+00 : f32
    %22 = vector.broadcast %cst_17 : f32 to vector<10x128xf32>
    %23 = arith.maximumf %21, %22 : vector<10x128xf32>
    %c0_18 = arith.constant 0 : index
    %c0_19 = arith.constant 0 : index
    %24 = vector.load %arg8[%c0_18, %c0_19] : memref<1x10xbf16, #tpu.memory_space<vmem>>, vector<1x10xbf16>
    %25 = arith.truncf %23 : vector<10x128xf32> to vector<10x128xbf16>
    %cst_20 = arith.constant dense<0.000000e+00> : vector<1x128xf32>
    %26 = tpu.matmul %24, %25, %cst_20 {dimension_numbers = #tpu.dot_dimension_numbers<[1], [0], [0], [1], [0, 0, 1, 1], [], []>} : vector<1x10xbf16>, vector<10x128xbf16>, vector<1x128xf32> -> vector<1x128xf32>
    %c0_21 = arith.constant 0 : index
    %c0_22 = arith.constant 0 : index
    %27 = vector.load %arg9[%c0_21, %c0_22] : memref<1x1xf32, #tpu.memory_space<vmem>>, vector<1x1xf32>
    %28 = vector.broadcast %27 : vector<1x1xf32> to vector<1x128xf32>
    %29 = arith.addf %26, %28 : vector<1x128xf32>
    %cst_23 = arith.constant 0.000000e+00 : f32
    %30 = vector.broadcast %cst_23 : f32 to vector<1x128xf32>
    %31 = arith.subf %30, %29 : vector<1x128xf32>
    %32 = math.exp %31 : vector<1x128xf32>
    %cst_24 = arith.constant 1.000000e+00 : f32
    %33 = vector.broadcast %cst_24 : f32 to vector<1x128xf32>
    %34 = arith.addf %33, %32 : vector<1x128xf32>
    %35 = tpu.reciprocal %34 {approx = true} : vector<1x128xf32> -> vector<1x128xf32>
    %c0_25 = arith.constant 0 : index
    %c0_26 = arith.constant 0 : index
    %36 = vector.load %arg10[%c0_25, %c0_26] : memref<1x128xf32, #tpu.memory_space<vmem>>, vector<1x128xf32>
    tpu.vector_store %arg10[%c0_25, %c0_26], %35 {strides = array<i32>} : memref<1x128xf32, #tpu.memory_space<vmem>>, vector<1x128xf32>,
    return
  }
  func.func @transform_0(%arg0: i32) -> (i32, i32) {
    %c0_i32 = arith.constant 0 : i32
    %c0_i32_0 = arith.constant 0 : i32
    return %c0_i32, %arg0 : i32, i32
  }
  func.func @transform_1(%arg0: i32) -> (i32, i32) {
    %c0_i32 = arith.constant 0 : i32
    %c0_i32_0 = arith.constant 0 : i32
    %c0_i32_1 = arith.constant 0 : i32
    return %c0_i32, %c0_i32_0 : i32, i32
  }
  func.func @transform_2(%arg0: i32) -> (i32, i32) {
    %c0_i32 = arith.constant 0 : i32
    %c0_i32_0 = arith.constant 0 : i32
    %c0_i32_1 = arith.constant 0 : i32
    return %c0_i32, %c0_i32_0 : i32, i32
  }
  func.func @transform_3(%arg0: i32) -> (i32, i32) {
    %c0_i32 = arith.constant 0 : i32
    %c0_i32_0 = arith.constant 0 : i32
    %c0_i32_1 = arith.constant 0 : i32
    return %c0_i32, %c0_i32_0 : i32, i32
  }
  func.func @transform_4(%arg0: i32) -> (i32, i32) {
    %c0_i32 = arith.constant 0 : i32
    %c0_i32_0 = arith.constant 0 : i32
    %c0_i32_1 = arith.constant 0 : i32
    return %c0_i32, %c0_i32_0 : i32, i32
  }
  func.func @transform_5(%arg0: i32) -> (i32, i32) {
    %c0_i32 = arith.constant 0 : i32
    %c0_i32_0 = arith.constant 0 : i32
    %c0_i32_1 = arith.constant 0 : i32
    return %c0_i32, %c0_i32_0 : i32, i32
  }
  func.func @transform_6(%arg0: i32) -> (i32, i32) {
    %c0_i32 = arith.constant 0 : i32
    %c0_i32_0 = arith.constant 0 : i32
    %c0_i32_1 = arith.constant 0 : i32
    return %c0_i32, %c0_i32_0 : i32, i32
  }
  func.func @transform_7(%arg0: i32) -> (i32, i32) {
    %c0_i32 = arith.constant 0 : i32
    %c0_i32_0 = arith.constant 0 : i32
    %c0_i32_1 = arith.constant 0 : i32
    return %c0_i32, %c0_i32_0 : i32, i32
  }
  func.func @transform_8(%arg0: i32) -> (i32, i32) {
    %c0_i32 = arith.constant 0 : i32
    %c0_i32_0 = arith.constant 0 : i32
    %c0_i32_1 = arith.constant 0 : i32
    return %c0_i32, %c0_i32_0 : i32, i32
  }
  func.func @transform_9(%arg0: i32) -> (i32, i32) {
    %c0_i32 = arith.constant 0 : i32
    %c0_i32_0 = arith.constant 0 : i32
    return %c0_i32, %arg0 : i32, i32
  }
}

</mosaic_0001>

<llo_original>
// kernel: tpu_custom_call.1
$region0: #{tpu_custom_call.1}
  #allocation0 [shape = 'u32[]', space=smem, size = 0x4, offset = 0x4, fixed_abs, tag = 'smem constant byte address 0x4 - core index']
  #allocation1 [shape = 'u32[144,128]{1,0:T(1,128)}', space=vmem, size = 0x12000, scoped, tag = 'internal scratch']
  #allocation2 [shape = 'f32[1,1]{1,0:T(1,128)S(1)}', space=vmem, size = 0x200, scoped, tag = 'scoped memory for tpu_custom_call.1']
  %s0 = inlined_call_operand.vmem [shape: bf16[7,128], index: 0, kind: input, shape index: {}]
  %s1 = inlined_call_operand.vmem [shape: bf16[72,7], index: 1, kind: input, shape index: {}]
  %s2 = inlined_call_operand.vmem [shape: f32[72,1], index: 2, kind: input, shape index: {}]
  %s3 = inlined_call_operand.vmem [shape: bf16[100,72], index: 3, kind: input, shape index: {}]
  %s4 = inlined_call_operand.vmem [shape: f32[100,1], index: 4, kind: input, shape index: {}]
  %s5 = inlined_call_operand.vmem [shape: bf16[10,100], index: 5, kind: input, shape index: {}]
  %s6 = inlined_call_operand.vmem [shape: f32[10,1], index: 6, kind: input, shape index: {}]
  %s7 = inlined_call_operand.vmem [shape: bf16[1,10], index: 7, kind: input, shape index: {}]
  %s8 = inlined_call_operand.<no memory space> [shape: f32[1,1], index: 8, kind: input, shape index: {}]
  %s9 = inlined_call_operand.hbm [shape: f32[1,128], index: 9, kind: output, shape index: {}]
  %s10 = sld [smem:[#allocation0]]
  $region46: #{tpu_custom_call.1} parent=0
    _
  %s12 = ssub.s32 1, %s10
  %s13 = scalar_select 0, %s12, %s10
  %v14 = vstv %s8
  %15 = vst [vmem:[#allocation2] sm:$0x1] %v14
  $region1: #{tpu_custom_call.1} parent=0
    #allocation3 [shape = 'u8[512]{0}', space=vmem, size = 0x400, scoped, tag = 'output window, operand 0, single buffered']
    #allocation4 [shape = 's32[1]{0}', space=sflag, size = 0x4, scoped, tag = 'scoped memory for tpu_custom_call.1']
    %16 = vsyncpa [#allocation4], 0
    // Predicated region
    $region2: #{tpu_custom_call.1} parent=1 // pred_check
      _
    $region3: #{tpu_custom_call.1} parent=1 // pred_check_branch
      %18 = sbr.rel (0) target = $region5
    $region4: #{tpu_custom_call.1} parent=1 // pred_region
      _
    $region5: #{tpu_custom_call.1} parent=1 // pred_fallthru
      _
    // Predicated region
    $region6: #{tpu_custom_call.1} parent=1 // pred_check
      _
    $region7: #{tpu_custom_call.1} parent=1 // pred_check_branch
      %20 = sbr.rel (0) target = $region9
    $region8: #{tpu_custom_call.1} parent=1 // pred_region
      _
    $region9: #{tpu_custom_call.1} parent=1 // pred_fallthru
      _
    // Predicated region
    $region10: #{tpu_custom_call.1} parent=1 // pred_check
      _
    $region11: #{tpu_custom_call.1} parent=1 // pred_check_branch
      %22 = sbr.rel (0) target = $region13
    $region12: #{tpu_custom_call.1} parent=1 // pred_region
      _
    $region13: #{tpu_custom_call.1} parent=1 // pred_fallthru
      _
    // Predicated region
    $region14: #{tpu_custom_call.1} parent=1 // pred_check
      _
    $region15: #{tpu_custom_call.1} parent=1 // pred_check_branch
      %24 = sbr.rel (0) target = $region17
    $region16: #{tpu_custom_call.1} parent=1 // pred_region
      _
    $region17: #{tpu_custom_call.1} parent=1 // pred_fallthru
      _
    // Predicated region
    $region18: #{tpu_custom_call.1} parent=1 // pred_check
      _
    $region19: #{tpu_custom_call.1} parent=1 // pred_check_branch
      %26 = sbr.rel (0) target = $region21
    $region20: #{tpu_custom_call.1} parent=1 // pred_region
      _
    $region21: #{tpu_custom_call.1} parent=1 // pred_fallthru
      _
    // Predicated region
    $region22: #{tpu_custom_call.1} parent=1 // pred_check
      _
    $region23: #{tpu_custom_call.1} parent=1 // pred_check_branch
      %28 = sbr.rel (0) target = $region25
    $region24: #{tpu_custom_call.1} parent=1 // pred_region
      _
    $region25: #{tpu_custom_call.1} parent=1 // pred_fallthru
      _
    // Predicated region
    $region26: #{tpu_custom_call.1} parent=1 // pred_check
      _
    $region27: #{tpu_custom_call.1} parent=1 // pred_check_branch
      %30 = sbr.rel (0) target = $region29
    $region28: #{tpu_custom_call.1} parent=1 // pred_region
      _
    $region29: #{tpu_custom_call.1} parent=1 // pred_fallthru
      _
    // Predicated region
    $region30: #{tpu_custom_call.1} parent=1 // pred_check
      _
    $region31: #{tpu_custom_call.1} parent=1 // pred_check_branch
      %32 = sbr.rel (0) target = $region33
    $region32: #{tpu_custom_call.1} parent=1 // pred_region
      _
    $region33: #{tpu_custom_call.1} parent=1 // pred_fallthru
      _
    // Predicated region
    $region34: #{tpu_custom_call.1} parent=1 // pred_check
      _
    $region35: #{tpu_custom_call.1} parent=1 // pred_check_branch
      %34 = sbr.rel (0) target = $region37
    $region36: #{tpu_custom_call.1} parent=1 // pred_region
      _
    $region37: #{tpu_custom_call.1} parent=1 // pred_fallthru
      _
    %v36 = vld [vmem:[%s0] sm:$0xf]
    %v37 = vld [vmem:[%s1] sm:$0xf]
    %v38 = vld [vmem:[%s1 + $0x4] sm:$0xf]
    %v39 = vld [vmem:[%s1 + $0x8] sm:$0xf]
    %v40 = vld [vmem:[%s1 + $0xc] sm:$0xf]
    %v41 = vld [vmem:[%s1 + $0x10] sm:$0xf]
    %v42 = vld [vmem:[%s1 + $0x14] sm:$0xf]
    %v43 = vld [vmem:[%s1 + $0x18] sm:$0xf]
    %v44 = vld [vmem:[%s1 + $0x1c] sm:$0xf]
    %v45 = vld [vmem:[%s1 + $0x20] sm:$0xf]
    %v46 = vld [vmem:[%s2] sm:$0xff]
    %v47 = vld [vmem:[%s2 + $0x8] sm:$0xff]
    %v48 = vld [vmem:[%s2 + $0x10] sm:$0xff]
    %v49 = vld [vmem:[%s2 + $0x18] sm:$0xff]
    %v50 = vld [vmem:[%s2 + $0x20] sm:$0xff]
    %v51 = vld [vmem:[%s2 + $0x28] sm:$0xff]
    %v52 = vld [vmem:[%s2 + $0x30] sm:$0xff]
    %v53 = vld [vmem:[%s2 + $0x38] sm:$0xff]
    %v54 = vld [vmem:[%s2 + $0x40] sm:$0xff]
    %56 = vset.pattern.permute.xlu0 0
    %57 = vperm.xlu0 %56, %v46
    %v58 = vpop.permute.xlu0 %57
    %61 = vset.pattern.permute.xlu0 0
    %62 = vperm.xlu0 %61, %v47
    %v63 = vpop.permute.xlu0 %62
    %66 = vset.pattern.permute.xlu0 0
    %67 = vperm.xlu0 %66, %v48
    %v68 = vpop.permute.xlu0 %67
    %71 = vset.pattern.permute.xlu0 0
    %72 = vperm.xlu0 %71, %v49
    %v73 = vpop.permute.xlu0 %72
    %76 = vset.pattern.permute.xlu0 0
    %77 = vperm.xlu0 %76, %v50
    %v78 = vpop.permute.xlu0 %77
    %81 = vset.pattern.permute.xlu0 0
    %82 = vperm.xlu0 %81, %v51
    %v83 = vpop.permute.xlu0 %82
    %86 = vset.pattern.permute.xlu0 0
    %87 = vperm.xlu0 %86, %v52
    %v88 = vpop.permute.xlu0 %87
    %91 = vset.pattern.permute.xlu0 0
    %92 = vperm.xlu0 %91, %v53
    %v93 = vpop.permute.xlu0 %92
    %96 = vset.pattern.permute.xlu0 0
    %97 = vperm.xlu0 %96, %v54
    %v98 = vpop.permute.xlu0 %97
    %v109 = vunpack.c.l.b16 %v37
    %v110 = vunpack.c.l.b16 %v38
    %v111 = vunpack.c.l.b16 %v39
    %v112 = vunpack.c.l.b16 %v40
    %v113 = vunpack.c.l.b16 %v41
    %v114 = vunpack.c.l.b16 %v42
    %v115 = vunpack.c.l.b16 %v43
    %v116 = vunpack.c.l.b16 %v44
    %v117 = vunpack.c.l.b16 %v45
    %v118 = vpack.c.b16 %v110, %v109
    %v119 = vpack.c.b16 %v112, %v111
    %v120 = vpack.c.b16 %v114, %v113
    %v121 = vpack.c.b16 %v116, %v115
    %v122 = vpack.c.b16 %v117, %v117
    %vm123 = vcmask 56320
    %v125 = vsel %vm123, %v118, 0
    %v128 = vsel %vm123, %v119, 0
    %v131 = vsel %vm123, %v120, 0
    %v134 = vsel %vm123, %v121, 0
    %v137 = vsel %vm123, %v122, 0
    %vm139 = vcmask 1042432
    %vm140 = vcmask 1043456
    %v141 = vsel %vm139, 4294967295, 65535
    %v142 = vsel %vm140, %v141, 0
    %v144 = vand.u32 %v36, %v142
    %146 = vmatprep.subr.bf16.mxu0 0
    %147 = vmatpush1.bf16.msra.mxu0 %v144
    %148 = vmatprep.subr.bf16.mxu0 0
    %149 = vmatpush1.bf16.msra.mxu0 0
    %150 = vmatprep.subr.bf16.mxu0 0
    %151 = vmatpush1.bf16.msra.mxu0 0
    %152 = vmatprep.subr.bf16.mxu0 0
    %153 = vmatpush1.bf16.msra.mxu0 0
    %154 = vmatprep.subr.bf16.mxu0 0
    %155 = vmatpush1.bf16.msra.mxu0 0
    %156 = vmatprep.subr.bf16.mxu0 0
    %157 = vmatpush1.bf16.msra.mxu0 0
    %158 = vmatprep.subr.bf16.mxu0 0
    %159 = vmatpush1.bf16.msra.mxu0 0
    %160 = vmatprep.subr.bf16.mxu0 0
    %161 = vmatpush1.bf16.msra.mxu0 0
    %162 = vmatprep.subr.bf16.mxu0 0
    %163 = vmatpush1.bf16.msra.mxu0 0
    %164 = vmatprep.subr.bf16.mxu0 0
    %165 = vmatpush1.bf16.msra.mxu0 0
    %166 = vmatprep.subr.bf16.mxu0 0
    %167 = vmatpush1.bf16.msra.mxu0 0
    %168 = vmatprep.subr.bf16.mxu0 0
    %169 = vmatpush1.bf16.msra.mxu0 0
    %170 = vmatprep.subr.bf16.mxu0 0
    %171 = vmatpush1.bf16.msra.mxu0 0
    %172 = vmatprep.subr.bf16.mxu0 0
    %173 = vmatpush1.bf16.msra.mxu0 0
    %174 = vmatprep.subr.bf16.mxu0 0
    %175 = vmatpush1.bf16.msra.mxu0 0
    %176 = vmatprep.subr.bf16.mxu0 0
    %177 = vmatpush1.bf16.msra.mxu0 0
    %178 = vmatprep.mubr.bf16.mxu0 0
    %179 = vmatmul.mubr.bf16.gmra.mrb[0].mxu0 %v125
    %v180 = vpop.f32.mrb[0].mxu0
    %v181 = vadd.f32 %v58, %v180
    %v182 = vpop.f32.mrb[0].mxu0
    %v183 = vpop.f32.mrb[0].mxu0
    %v184 = vadd.f32 %v63, %v183
    %v185 = vpop.f32.mrb[0].mxu0
    %186 = vmatprep.mubr.bf16.mxu0 0
    %187 = vmatmul.mubr.bf16.gmra.mrb[0].mxu0 %v128
    %v188 = vpop.f32.mrb[0].mxu0
    %v189 = vadd.f32 %v68, %v188
    %v190 = vpop.f32.mrb[0].mxu0
    %v191 = vpop.f32.mrb[0].mxu0
    %v192 = vadd.f32 %v73, %v191
    %v193 = vpop.f32.mrb[0].mxu0
    %194 = vmatprep.mubr.bf16.mxu0 0
    %195 = vmatmul.mubr.bf16.gmra.mrb[0].mxu0 %v131
    %v196 = vpop.f32.mrb[0].mxu0
    %v197 = vadd.f32 %v78, %v196
    %v198 = vpop.f32.mrb[0].mxu0
    %v199 = vpop.f32.mrb[0].mxu0
    %v200 = vadd.f32 %v83, %v199
    %v201 = vpop.f32.mrb[0].mxu0
    %202 = vmatprep.mubr.bf16.mxu0 0
    %203 = vmatmul.mubr.bf16.gmra.mrb[0].mxu0 %v134
    %v204 = vpop.f32.mrb[0].mxu0
    %v205 = vadd.f32 %v88, %v204
    %v206 = vpop.f32.mrb[0].mxu0
    %v207 = vpop.f32.mrb[0].mxu0
    %v208 = vadd.f32 %v93, %v207
    %v209 = vpop.f32.mrb[0].mxu0
    %210 = vmatprep.mubr.bf16.mxu0 0
    %211 = vmatmul.mubr.bf16.gmra.mrb[0].mxu0 %v137
    %v212 = vpop.f32.mrb[0].mxu0
    %v213 = vadd.f32 %v98, %v212
    %v214 = vpop.f32.mrb[0].mxu0
    %v215 = vpop.f32.mrb[0].mxu0
    %v216 = vpop.f32.mrb[0].mxu0
    %217 = vdwg.mxu0
    %v218 = vmax.f32 %v181, 0.0
    %v219 = vmax.f32 %v184, 0.0
    %v220 = vmax.f32 %v189, 0.0
    %v221 = vmax.f32 %v192, 0.0
    %v222 = vmax.f32 %v197, 0.0
    %v223 = vmax.f32 %v200, 0.0
    %v224 = vmax.f32 %v205, 0.0
    %v225 = vmax.f32 %v208, 0.0
    %v226 = vmax.f32 %v213, 0.0
    %v227 = vld [vmem:[%s3] sm:$0xf]
    %v228 = vld [vmem:[%s3 + $0x4] sm:$0xf]
    %v229 = vld [vmem:[%s3 + $0x8] sm:$0xf]
    %v230 = vld [vmem:[%s3 + $0xc] sm:$0xf]
    %v231 = vld [vmem:[%s3 + $0x10] sm:$0xf]
    %v232 = vld [vmem:[%s3 + $0x14] sm:$0xf]
    %v233 = vld [vmem:[%s3 + $0x18] sm:$0xf]
    %v234 = vld [vmem:[%s3 + $0x1c] sm:$0xf]
    %v235 = vld [vmem:[%s3 + $0x20] sm:$0xf]
    %v236 = vld [vmem:[%s3 + $0x24] sm:$0xf]
    %v237 = vld [vmem:[%s3 + $0x28] sm:$0xf]
    %v238 = vld [vmem:[%s3 + $0x2c] sm:$0xf]
    %v239 = vld [vmem:[%s3 + $0x30] sm:$0x3]
    %v240 = vpack.c.bf16 %v219, %v218
    %v241 = vpack.c.bf16 %v221, %v220
    %v242 = vpack.c.bf16 %v223, %v222
    %v243 = vpack.c.bf16 %v225, %v224
    %v244 = vpack.c.bf16 %v226, %v226
    %v245 = vld [vmem:[%s4] sm:$0xff]
    %v246 = vld [vmem:[%s4 + $0x8] sm:$0xff]
    %v247 = vld [vmem:[%s4 + $0x10] sm:$0xff]
    %v248 = vld [vmem:[%s4 + $0x18] sm:$0xff]
    %v249 = vld [vmem:[%s4 + $0x20] sm:$0xff]
    %v250 = vld [vmem:[%s4 + $0x28] sm:$0xff]
    %v251 = vld [vmem:[%s4 + $0x30] sm:$0xff]
    %v252 = vld [vmem:[%s4 + $0x38] sm:$0xff]
    %v253 = vld [vmem:[%s4 + $0x40] sm:$0xff]
    %v254 = vld [vmem:[%s4 + $0x48] sm:$0xff]
    %v255 = vld [vmem:[%s4 + $0x50] sm:$0xff]
    %v256 = vld [vmem:[%s4 + $0x58] sm:$0xff]
    %v257 = vld [vmem:[%s4 + $0x60] sm:$0xf]
    %259 = vset.pattern.permute.xlu0 0
    %260 = vperm.xlu0 %259, %v245
    %v261 = vpop.permute.xlu0 %260
    %264 = vset.pattern.permute.xlu0 0
    %265 = vperm.xlu0 %264, %v246
    %v266 = vpop.permute.xlu0 %265
    %269 = vset.pattern.permute.xlu0 0
    %270 = vperm.xlu0 %269, %v247
    %v271 = vpop.permute.xlu0 %270
    %274 = vset.pattern.permute.xlu0 0
    %275 = vperm.xlu0 %274, %v248
    %v276 = vpop.permute.xlu0 %275
    %279 = vset.pattern.permute.xlu0 0
    %280 = vperm.xlu0 %279, %v249
    %v281 = vpop.permute.xlu0 %280
    %284 = vset.pattern.permute.xlu0 0
    %285 = vperm.xlu0 %284, %v250
    %v286 = vpop.permute.xlu0 %285
    %289 = vset.pattern.permute.xlu0 0
    %290 = vperm.xlu0 %289, %v251
    %v291 = vpop.permute.xlu0 %290
    %294 = vset.pattern.permute.xlu0 0
    %295 = vperm.xlu0 %294, %v252
    %v296 = vpop.permute.xlu0 %295
    %299 = vset.pattern.permute.xlu0 0
    %300 = vperm.xlu0 %299, %v253
    %v301 = vpop.permute.xlu0 %300
    %304 = vset.pattern.permute.xlu0 0
    %305 = vperm.xlu0 %304, %v254
    %v306 = vpop.permute.xlu0 %305
    %309 = vset.pattern.permute.xlu0 0
    %310 = vperm.xlu0 %309, %v255
    %v311 = vpop.permute.xlu0 %310
    %314 = vset.pattern.permute.xlu0 0
    %315 = vperm.xlu0 %314, %v256
    %v316 = vpop.permute.xlu0 %315
    %319 = vset.pattern.permute.xlu0 0
    %320 = vperm.xlu0 %319, %v257
    %v321 = vpop.permute.xlu0 %320
    %v336 = vunpack.c.l.b16 %v227
    %v337 = vunpack.c.l.b16 %v228
    %v338 = vunpack.c.l.b16 %v229
    %v339 = vunpack.c.l.b16 %v230
    %v340 = vunpack.c.l.b16 %v231
    %v341 = vunpack.c.l.b16 %v232
    %v342 = vunpack.c.l.b16 %v233
    %v343 = vunpack.c.l.b16 %v234
    %v344 = vunpack.c.l.b16 %v235
    %v345 = vunpack.c.l.b16 %v236
    %v346 = vunpack.c.l.b16 %v237
    %v347 = vunpack.c.l.b16 %v238
    %v348 = vunpack.c.l.b16 %v239
    %v349 = vpack.c.b16 %v337, %v336
    %v350 = vpack.c.b16 %v339, %v338
    %v351 = vpack.c.b16 %v341, %v340
    %v352 = vpack.c.b16 %v343, %v342
    %v353 = vpack.c.b16 %v345, %v344
    %v354 = vpack.c.b16 %v347, %v346
    %v355 = vpack.c.b16 %v348, %v348
    %vm356 = vcmask 588800
    %v358 = vsel %vm356, %v349, 0
    %v361 = vsel %vm356, %v350, 0
    %v364 = vsel %vm356, %v351, 0
    %v367 = vsel %vm356, %v352, 0
    %v370 = vsel %vm356, %v353, 0
    %v373 = vsel %vm356, %v354, 0
    %v376 = vsel %vm356, %v355, 0
    %v379 = vsel %vm140, %v244, 0
    %381 = vmatprep.subr.bf16.mxu0 0
    %382 = vmatpush1.bf16.msra.mxu0 %v240
    %383 = vmatprep.subr.bf16.mxu0 0
    %384 = vmatpush1.bf16.msra.mxu0 %v241
    %385 = vmatprep.subr.bf16.mxu0 0
    %386 = vmatpush1.bf16.msra.mxu0 %v242
    %387 = vmatprep.subr.bf16.mxu0 0
    %388 = vmatpush1.bf16.msra.mxu0 %v243
    %389 = vmatprep.subr.bf16.mxu0 0
    %390 = vmatpush1.bf16.msra.mxu0 %v379
    %391 = vmatprep.subr.bf16.mxu0 0
    %392 = vmatpush1.bf16.msra.mxu0 0
    %393 = vmatprep.subr.bf16.mxu0 0
    %394 = vmatpush1.bf16.msra.mxu0 0
    %395 = vmatprep.subr.bf16.mxu0 0
    %396 = vmatpush1.bf16.msra.mxu0 0
    %397 = vmatprep.subr.bf16.mxu0 0
    %398 = vmatpush1.bf16.msra.mxu0 0
    %399 = vmatprep.subr.bf16.mxu0 0
    %400 = vmatpush1.bf16.msra.mxu0 0
    %401 = vmatprep.subr.bf16.mxu0 0
    %402 = vmatpush1.bf16.msra.mxu0 0
    %403 = vmatprep.subr.bf16.mxu0 0
    %404 = vmatpush1.bf16.msra.mxu0 0
    %405 = vmatprep.subr.bf16.mxu0 0
    %406 = vmatpush1.bf16.msra.mxu0 0
    %407 = vmatprep.subr.bf16.mxu0 0
    %408 = vmatpush1.bf16.msra.mxu0 0
    %409 = vmatprep.subr.bf16.mxu0 0
    %410 = vmatpush1.bf16.msra.mxu0 0
    %411 = vmatprep.subr.bf16.mxu0 0
    %412 = vmatpush1.bf16.msra.mxu0 0
    %413 = vmatprep.mubr.bf16.mxu0 0
    %414 = vmatmul.mubr.bf16.gmra.mrb[0].mxu0 %v358
    %v415 = vpop.f32.mrb[0].mxu0
    %v416 = vadd.f32 %v261, %v415
    %v417 = vpop.f32.mrb[0].mxu0
    %v418 = vpop.f32.mrb[0].mxu0
    %v419 = vadd.f32 %v266, %v418
    %v420 = vpop.f32.mrb[0].mxu0
    %421 = vmatprep.mubr.bf16.mxu0 0
    %422 = vmatmul.mubr.bf16.gmra.mrb[0].mxu0 %v361
    %v423 = vpop.f32.mrb[0].mxu0
    %v424 = vadd.f32 %v271, %v423
    %v425 = vpop.f32.mrb[0].mxu0
    %v426 = vpop.f32.mrb[0].mxu0
    %v427 = vadd.f32 %v276, %v426
    %v428 = vpop.f32.mrb[0].mxu0
    %429 = vmatprep.mubr.bf16.mxu0 0
    %430 = vmatmul.mubr.bf16.gmra.mrb[0].mxu0 %v364
    %v431 = vpop.f32.mrb[0].mxu0
    %v432 = vadd.f32 %v281, %v431
    %v433 = vpop.f32.mrb[0].mxu0
    %v434 = vpop.f32.mrb[0].mxu0
    %v435 = vadd.f32 %v286, %v434
    %v436 = vpop.f32.mrb[0].mxu0
    %437 = vmatprep.mubr.bf16.mxu0 0
    %438 = vmatmul.mubr.bf16.gmra.mrb[0].mxu0 %v367
    %v439 = vpop.f32.mrb[0].mxu0
    %v440 = vadd.f32 %v291, %v439
    %v441 = vpop.f32.mrb[0].mxu0
    %v442 = vpop.f32.mrb[0].mxu0
    %v443 = vadd.f32 %v296, %v442
    %v444 = vpop.f32.mrb[0].mxu0
    %445 = vmatprep.mubr.bf16.mxu0 0
    %446 = vmatmul.mubr.bf16.gmra.mrb[0].mxu0 %v370
    %v447 = vpop.f32.mrb[0].mxu0
    %v448 = vadd.f32 %v301, %v447
    %v449 = vpop.f32.mrb[0].mxu0
    %v450 = vpop.f32.mrb[0].mxu0
    %v451 = vadd.f32 %v306, %v450
    %v452 = vpop.f32.mrb[0].mxu0
    %453 = vmatprep.mubr.bf16.mxu0 0
    %454 = vmatmul.mubr.bf16.gmra.mrb[0].mxu0 %v373
    %v455 = vpop.f32.mrb[0].mxu0
    %v456 = vadd.f32 %v311, %v455
    %v457 = vpop.f32.mrb[0].mxu0
    %v458 = vpop.f32.mrb[0].mxu0
    %v459 = vadd.f32 %v316, %v458
    %v460 = vpop.f32.mrb[0].mxu0
    %461 = vmatprep.mubr.bf16.mxu0 0
    %462 = vmatmul.mubr.bf16.gmra.mrb[0].mxu0 %v376
    %v463 = vpop.f32.mrb[0].mxu0
    %v464 = vadd.f32 %v321, %v463
    %v465 = vpop.f32.mrb[0].mxu0
    %v466 = vpop.f32.mrb[0].mxu0
    %v467 = vpop.f32.mrb[0].mxu0
    %468 = vdwg.mxu0
    %v469 = vmax.f32 %v416, 0.0
    %v470 = vmax.f32 %v419, 0.0
    %v471 = vmax.f32 %v424, 0.0
    %v472 = vmax.f32 %v427, 0.0
    %v473 = vmax.f32 %v432, 0.0
    %v474 = vmax.f32 %v435, 0.0
    %v475 = vmax.f32 %v440, 0.0
    %v476 = vmax.f32 %v443, 0.0
    %v477 = vmax.f32 %v448, 0.0
    %v478 = vmax.f32 %v451, 0.0
    %v479 = vmax.f32 %v456, 0.0
    %v480 = vmax.f32 %v459, 0.0
    %v481 = vmax.f32 %v464, 0.0
    %v482 = vld [vmem:[%s5] sm:$0xf]
    %v483 = vld [vmem:[%s5 + $0x4] sm:$0x1]
    %v484 = vpack.c.bf16 %v470, %v469
    %v485 = vpack.c.bf16 %v472, %v471
    %v486 = vpack.c.bf16 %v474, %v473
    %v487 = vpack.c.bf16 %v476, %v475
    %v488 = vpack.c.bf16 %v478, %v477
    %v489 = vpack.c.bf16 %v480, %v479
    %v490 = vpack.c.bf16 %v481, %v481
    %v491 = vld [vmem:[%s6] sm:$0xff]
    %v492 = vld [vmem:[%s6 + $0x8] sm:$0x3]
    %494 = vset.pattern.permute.xlu0 0
    %495 = vperm.xlu0 %494, %v491
    %v496 = vpop.permute.xlu0 %495
    %499 = vset.pattern.permute.xlu0 0
    %500 = vperm.xlu0 %499, %v492
    %v501 = vpop.permute.xlu0 %500
    %v505 = vunpack.c.l.b16 %v482
    %v506 = vunpack.c.l.b16 %v483
    %v507 = vpack.c.b16 %v506, %v505
    %vm508 = vcmask 818176
    %v510 = vsel %vm508, %v507, 0
    %vm512 = vcmask 1041408
    %v514 = vsel %vm512, %v490, 0
    %516 = vmatprep.subr.bf16.mxu0 0
    %517 = vmatpush1.bf16.msra.mxu0 %v484
    %518 = vmatprep.subr.bf16.mxu0 0
    %519 = vmatpush1.bf16.msra.mxu0 %v485
    %520 = vmatprep.subr.bf16.mxu0 0
    %521 = vmatpush1.bf16.msra.mxu0 %v486
    %522 = vmatprep.subr.bf16.mxu0 0
    %523 = vmatpush1.bf16.msra.mxu0 %v487
    %524 = vmatprep.subr.bf16.mxu0 0
    %525 = vmatpush1.bf16.msra.mxu0 %v488
    %526 = vmatprep.subr.bf16.mxu0 0
    %527 = vmatpush1.bf16.msra.mxu0 %v489
    %528 = vmatprep.subr.bf16.mxu0 0
    %529 = vmatpush1.bf16.msra.mxu0 %v514
    %530 = vmatprep.subr.bf16.mxu0 0
    %531 = vmatpush1.bf16.msra.mxu0 0
    %532 = vmatprep.subr.bf16.mxu0 0
    %533 = vmatpush1.bf16.msra.mxu0 0
    %534 = vmatprep.subr.bf16.mxu0 0
    %535 = vmatpush1.bf16.msra.mxu0 0
    %536 = vmatprep.subr.bf16.mxu0 0
    %537 = vmatpush1.bf16.msra.mxu0 0
    %538 = vmatprep.subr.bf16.mxu0 0
    %539 = vmatpush1.bf16.msra.mxu0 0
    %540 = vmatprep.subr.bf16.mxu0 0
    %541 = vmatpush1.bf16.msra.mxu0 0
    %542 = vmatprep.subr.bf16.mxu0 0
    %543 = vmatpush1.bf16.msra.mxu0 0
    %544 = vmatprep.subr.bf16.mxu0 0
    %545 = vmatpush1.bf16.msra.mxu0 0
    %546 = vmatprep.subr.bf16.mxu0 0
    %547 = vmatpush1.bf16.msra.mxu0 0
    %548 = vmatprep.mubr.bf16.mxu0 0
    %549 = vmatmul.mubr.bf16.gmra.mrb[0].mxu0 %v510
    %v550 = vpop.f32.mrb[0].mxu0
    %v551 = vadd.f32 %v496, %v550
    %v552 = vpop.f32.mrb[0].mxu0
    %v553 = vpop.f32.mrb[0].mxu0
    %v554 = vadd.f32 %v501, %v553
    %v555 = vpop.f32.mrb[0].mxu0
    %556 = vdwg.mxu0
    %v557 = vmax.f32 %v551, 0.0
    %v558 = vmax.f32 %v554, 0.0
    %v559 = vld [vmem:[%s7] sm:$0x1]
    %v560 = vpack.c.bf16 %v558, %v557
    %v561 = vld [vmem:[#allocation2] sm:$0x1]
    %563 = vset.pattern.permute.xlu0 0
    %564 = vperm.xlu0 %563, %v561
    %v565 = vpop.permute.xlu0 %564
    %v567 = vlaneseq
    %v568 = vshrl.u32 %v567, 7
    %v569 = vsub.s32 0, %v568
    %v570 = vrot.slane %v565, %v569
    %vm571 = vcmask 80896
    %v573 = vsel %vm571, %v559, 0
    %vm575 = vcmask 1044480
    %v577 = vsel %vm575, %v560, 0
    %579 = vmatprep.subr.bf16.mxu0 0
    %580 = vmatpush1.bf16.msra.mxu0 %v577
    %581 = vmatprep.subr.bf16.mxu0 0
    %582 = vmatpush1.bf16.msra.mxu0 0
    %583 = vmatprep.subr.bf16.mxu0 0
    %584 = vmatpush1.bf16.msra.mxu0 0
    %585 = vmatprep.subr.bf16.mxu0 0
    %586 = vmatpush1.bf16.msra.mxu0 0
    %587 = vmatprep.subr.bf16.mxu0 0
    %588 = vmatpush1.bf16.msra.mxu0 0
    %589 = vmatprep.subr.bf16.mxu0 0
    %590 = vmatpush1.bf16.msra.mxu0 0
    %591 = vmatprep.subr.bf16.mxu0 0
    %592 = vmatpush1.bf16.msra.mxu0 0
    %593 = vmatprep.subr.bf16.mxu0 0
    %594 = vmatpush1.bf16.msra.mxu0 0
    %595 = vmatprep.subr.bf16.mxu0 0
    %596 = vmatpush1.bf16.msra.mxu0 0
    %597 = vmatprep.subr.bf16.mxu0 0
    %598 = vmatpush1.bf16.msra.mxu0 0
    %599 = vmatprep.subr.bf16.mxu0 0
    %600 = vmatpush1.bf16.msra.mxu0 0
    %601 = vmatprep.subr.bf16.mxu0 0
    %602 = vmatpush1.bf16.msra.mxu0 0
    %603 = vmatprep.subr.bf16.mxu0 0
    %604 = vmatpush1.bf16.msra.mxu0 0
    %605 = vmatprep.subr.bf16.mxu0 0
    %606 = vmatpush1.bf16.msra.mxu0 0
    %607 = vmatprep.subr.bf16.mxu0 0
    %608 = vmatpush1.bf16.msra.mxu0 0
    %609 = vmatprep.subr.bf16.mxu0 0
    %610 = vmatpush1.bf16.msra.mxu0 0
    %611 = vmatprep.mubr.bf16.mxu0 0
    %612 = vmatmul.mubr.bf16.gmra.mrb[0].mxu0 %v573
    %v613 = vpop.f32.mrb[0].mxu0
    %v614 = vadd.f32 %v570, %v613
    %v615 = vpop.f32.mrb[0].mxu0
    %v616 = vpop.f32.mrb[0].mxu0
    %v617 = vpop.f32.mrb[0].mxu0
    %618 = vdwg.mxu0
    %v619 = vsub.f32 0.0, %v614
    %v620 = vmul.f32 %v619, 1.442695
    %v621 = vpow.pop %v620
    %v622 = vadd.f32 %v621, 1.0
    %v623 = vrcp.pop %v622
    %624 = vst [vmem:[#allocation3] sm:$0x1] %v623
    // Predicated region
    $region38: #{tpu_custom_call.1} parent=1 // pred_check
      _
    $region39: #{tpu_custom_call.1} parent=1 // pred_check_branch
      %626 = sbr.rel (0) target = $region41
    $region40: #{tpu_custom_call.1} parent=1 // pred_region
      %s628 = ssub.s32 16, 16
      %629 = vsyncadd [#allocation4], %s628
      %s631 = sshll.u32 [#allocation3], 4
      %s632 = int_to_ptr.vmem [resolvable:$true] %s631
      %634 = dma.vmem_to_hbm [thread:$0]  %s632, 16, %s9, [#allocation4]
    $region41: #{tpu_custom_call.1} parent=1 // pred_fallthru
      _
    // Predicated region
    $region42: #{tpu_custom_call.1} parent=1 // pred_check
      _
    $region43: #{tpu_custom_call.1} parent=1 // pred_check_branch
      %636 = sbr.rel (0) target = $region45
    $region44: #{tpu_custom_call.1} parent=1 // pred_region
      %637 = dma.done [#allocation4], 16
    $region45: #{tpu_custom_call.1} parent=1 // pred_fallthru
      _
    %638 = vsyncpa [#allocation4], 1

</llo_original>
